<compile_context>
chip_gen: v7x
topology: tpu7x:2x2x1
jax: 0.10.0
libtpu: 0.0.40
codegen_flags: <defaults>
</compile_context>

<pallas_src>
import jax
import jax.numpy as jnp
from jax.experimental import pallas as pl
from jax.experimental.pallas import tpu as pltpu

_MIN_LANES = 128
_PREF_LANES = 1024          # preferred lane-dense slab width
_BLOCK_ROWS = 512           # 512 x 1024 x 4 B = 2 MiB per f32 block


def _affine_relu_kernel(mc_ref, x_ref, o_ref):
    # mc_ref: SMEM scalars [m, c] in float32. Compute in f32, cast on store.
    m = mc_ref[0]
    c = mc_ref[1]
    x = x_ref[...].astype(jnp.float32)
    o_ref[...] = jnp.maximum(m * x + c, 0.0).astype(o_ref.dtype)


def affine_relu(x, m=1.0, c=0.0):
    """Applies relu(m * x + c) elementwise via a single Pallas TPU kernel."""
    orig_shape = x.shape
    orig_dtype = x.dtype
    n = x.size
    if n == 0:
        return x

    flat = x.reshape(-1)

    # Pick the widest lane count that evenly divides n (keeps loads/stores
    # lane-dense without any padding copy).
    lanes = None
    for w in (_PREF_LANES, 512, 256, _MIN_LANES):
        if n % w == 0:
            lanes = w
            break
    padded = lanes is None
    if padded:
        # TODO(synk): replace this rare fallback with an in-kernel masked tail
        # to avoid the extra HBM round trip for non-multiple-of-128 sizes.
        lanes = _MIN_LANES
        n_pad = pl.cdiv(n, lanes) * lanes
        flat = jnp.pad(flat, (0, n_pad - n))

    x2d = flat.reshape(-1, lanes)
    rows = x2d.shape[0]
    # Full-extent block when small; otherwise 512 rows (multiple of 8/16/32,
    # so it is a legal sublane count for f32/bf16/int8 alike).
    block_rows = _BLOCK_ROWS if rows >= _BLOCK_ROWS else rows
    grid = (pl.cdiv(rows, block_rows),)

    mc = jnp.asarray([m, c], dtype=jnp.float32)

    out2d = pl.pallas_call(
        _affine_relu_kernel,
        out_shape=jax.ShapeDtypeStruct((rows, lanes), orig_dtype),
        grid_spec=pltpu.PrefetchScalarGridSpec(
            num_scalar_prefetch=1,
            grid=grid,
            in_specs=[pl.BlockSpec((block_rows, lanes), lambda i, _mc: (i, 0))],
            out_specs=pl.BlockSpec((block_rows, lanes), lambda i, _mc: (i, 0)),
        ),
        compiler_params=pltpu.CompilerParams(
            dimension_semantics=("parallel",),
        ),
    )(mc, x2d)

    out_flat = out2d.reshape(-1)
    if padded:
        out_flat = out_flat[:n]
    return out_flat.reshape(orig_shape)


if __name__ == "__main__":
    key = jax.random.PRNGKey(0)
    # Small NCHW input, matching the PyTorch module's conv-style usage.
    x = jax.random.normal(key, (2, 4, 16, 16), dtype=jnp.float32)

    m, c = 2.0, 0.5  # AffineReLU(m=2, c=0.5)
    y = affine_relu(x, m=m, c=c)
    y = jax.block_until_ready(y)

    # Reference check against plain JAX.
    y_ref = jnp.maximum(m * x + c, 0.0)
    assert y.shape == x.shape and y.dtype == x.dtype
    assert jnp.allclose(y, y_ref, atol=1e-6), "mismatch vs reference"

    print("KERNEL_OK")
</pallas_src>

<mosaic_0001>
module attributes {stable_mosaic.version = 11 : i64} {
  func.func @_affine_relu_kernel(%arg0: i32, %arg1: memref<2xf32, #tpu.memory_space<smem>>, %arg2: memref<2x1024xf32, #tpu.memory_space<vmem>>, %arg3: memref<2x1024xf32, #tpu.memory_space<vmem>>) attributes {dimension_semantics = [#tpu.dimension_semantics<parallel>], iteration_bounds = array<i64: 1>, scalar_prefetch = 1 : i64, scratch_operands = 0 : i64, tpu.core_type = #tpu.core_type<tc>, window_params = [{transform_indices = @transform_0, window_bounds = array<i64: 2, 1024>}, {transform_indices = @transform_1, window_bounds = array<i64: 2, 1024>}]} {
    %c0 = arith.constant 0 : index
    %0 = memref.load %arg1[%c0] : memref<2xf32, #tpu.memory_space<smem>>
    %c1 = arith.constant 1 : index
    %1 = memref.load %arg1[%c1] : memref<2xf32, #tpu.memory_space<smem>>
    %c0_0 = arith.constant 0 : index
    %c0_1 = arith.constant 0 : index
    %2 = vector.load %arg2[%c0_0, %c0_1] : memref<2x1024xf32, #tpu.memory_space<vmem>>, vector<2x1024xf32>
    %3 = vector.broadcast %0 : f32 to vector<2x1024xf32>
    %4 = arith.mulf %3, %2 : vector<2x1024xf32>
    %5 = vector.broadcast %1 : f32 to vector<2x1024xf32>
    %6 = arith.addf %4, %5 : vector<2x1024xf32>
    %cst = arith.constant 0.000000e+00 : f32
    %7 = vector.broadcast %cst : f32 to vector<2x1024xf32>
    %8 = arith.maximumf %6, %7 : vector<2x1024xf32>
    %c0_2 = arith.constant 0 : index
    %c0_3 = arith.constant 0 : index
    %9 = vector.load %arg3[%c0_2, %c0_3] : memref<2x1024xf32, #tpu.memory_space<vmem>>, vector<2x1024xf32>
    tpu.vector_store %arg3[%c0_2, %c0_3], %8 {strides = array<i32>} : memref<2x1024xf32, #tpu.memory_space<vmem>>, vector<2x1024xf32>,
    return
  }
  func.func @transform_0(%arg0: i32, %arg1: memref<2xf32, #tpu.memory_space<smem>>) -> (i32, i32) {
    %c0_i32 = arith.constant 0 : i32
    %c0_i32_0 = arith.constant 0 : i32
    return %arg0, %c0_i32 : i32, i32
  }
  func.func @transform_1(%arg0: i32, %arg1: memref<2xf32, #tpu.memory_space<smem>>) -> (i32, i32) {
    %c0_i32 = arith.constant 0 : i32
    %c0_i32_0 = arith.constant 0 : i32
    return %arg0, %c0_i32 : i32, i32
  }
}

</mosaic_0001>

<llo_original>
// kernel: tpu_custom_call.1
$region0: #{tpu_custom_call.1}
  #allocation0 [shape = 'u32[]', space=smem, size = 0x4, offset = 0x4, fixed_abs, tag = 'smem constant byte address 0x4 - core index']
  #allocation1 [shape = 'u32[144,128]{1,0:T(1,128)}', space=vmem, size = 0x12000, scoped, tag = 'internal scratch']
  #allocation2 [shape = 's32[1]{0}', space=sflag, size = 0x4, scoped, tag = 'scoped memory for tpu_custom_call.1']
  #allocation3 [shape = 'u8[512]{0}', space=smem, size = 0x200, scoped, tag = 'prefetched SMEM operand 0']
  %s0 = inlined_call_operand.hbm [shape: f32[2], index: 0, kind: input, shape index: {}]
  %s1 = inlined_call_operand.hbm [shape: f32[2,1024], index: 1, kind: input, shape index: {}]
  %s2 = inlined_call_operand.hbm [shape: f32[2,1024], index: 2, kind: output, shape index: {}]
  %s3 = sld [smem:[#allocation0]]
  $region18: #{tpu_custom_call.1} parent=0
    _
  %s5 = ssub.s32 1, %s3
  %s6 = scalar_select 0, %s5, %s3
  %8 = dma.hbm_to_smem %s0, 16, [#allocation3], [#allocation2]
  %9 = dma.done [#allocation2], 16
  %10 = sfence
  $region1: #{tpu_custom_call.1} parent=0
    #allocation4 [shape = 'u8[8192]{0}', space=vmem, size = 0x2000, scoped, tag = 'input window, operand 1, single buffered']
    #allocation5 [shape = 's32[1]{0}', space=sflag, size = 0x4, scoped, tag = 'scoped memory for tpu_custom_call.1']
    #allocation6 [shape = 's32[1]{0}', space=sflag, size = 0x4, scoped, tag = 'scoped memory for tpu_custom_call.1']
    #allocation7 [shape = 'u8[8192]{0}', space=vmem, size = 0x2000, scoped, tag = 'output window, operand 0, single buffered']
    %11 = vsyncpa [#allocation5], 0
    %12 = vsyncpa [#allocation6], 0
    // Predicated region
    $region2: #{tpu_custom_call.1} parent=1 // pred_check
      _
    $region3: #{tpu_custom_call.1} parent=1 // pred_check_branch
      %14 = sbr.rel (0) target = $region5
    $region4: #{tpu_custom_call.1} parent=1 // pred_region
      %s16 = ssub.s32 256, 256
      %17 = vsyncadd [#allocation5], %s16
      %s19 = sshll.u32 [#allocation4], 4
      %s20 = int_to_ptr.vmem [resolvable:$true] %s19
      %22 = dma.hbm_to_vmem [thread:$0]  %s1, 256, %s20, [#allocation5]
    $region5: #{tpu_custom_call.1} parent=1 // pred_fallthru
      _
    // Predicated region
    $region6: #{tpu_custom_call.1} parent=1 // pred_check
      _
    $region7: #{tpu_custom_call.1} parent=1 // pred_check_branch
      %24 = sbr.rel (0) target = $region9
    $region8: #{tpu_custom_call.1} parent=1 // pred_region
      %25 = dma.done [#allocation5], 256
    $region9: #{tpu_custom_call.1} parent=1 // pred_fallthru
      _
    %s26 = sld [smem:[#allocation3]]
    %s27 = sld [smem:[#allocation3 + $0x1]]
    %v28 = vld [vmem:[#allocation4] sm:$0xff]
    %v29 = vld [vmem:[#allocation4 + $0x8] sm:$0xff]
    %v30 = vstv %s26
    %v31 = vmul.f32 %v30, %v28
    %v32 = vmul.f32 %v30, %v29
    %v33 = vstv %s27
    %v34 = vadd.f32 %v31, %v33
    %v35 = vadd.f32 %v32, %v33
    %v36 = vmax.f32 %v34, 0.0
    %v37 = vmax.f32 %v35, 0.0
    %38 = vst [vmem:[#allocation7] sm:$0xff] %v36
    %39 = vst [vmem:[#allocation7 + $0x8] sm:$0xff] %v37
    // Predicated region
    $region10: #{tpu_custom_call.1} parent=1 // pred_check
      _
    $region11: #{tpu_custom_call.1} parent=1 // pred_check_branch
      %41 = sbr.rel (0) target = $region13
    $region12: #{tpu_custom_call.1} parent=1 // pred_region
      %s43 = ssub.s32 256, 256
      %44 = vsyncadd [#allocation6], %s43
      %s46 = sshll.u32 [#allocation7], 4
      %s47 = int_to_ptr.vmem [resolvable:$true] %s46
      %49 = dma.vmem_to_hbm [thread:$0]  %s47, 256, %s2, [#allocation6]
    $region13: #{tpu_custom_call.1} parent=1 // pred_fallthru
      _
    // Predicated region
    $region14: #{tpu_custom_call.1} parent=1 // pred_check
      _
    $region15: #{tpu_custom_call.1} parent=1 // pred_check_branch
      %51 = sbr.rel (0) target = $region17
    $region16: #{tpu_custom_call.1} parent=1 // pred_region
      %52 = dma.done [#allocation6], 256
    $region17: #{tpu_custom_call.1} parent=1 // pred_fallthru
      _
    %53 = vsyncpa [#allocation5], 1
    %54 = vsyncpa [#allocation6], 1

</llo_original>
